<compile_context>
chip_gen: v5e
topology: v5e:2x2
jax: 0.10.0
libtpu: 0.0.40
codegen_flags: <defaults>
</compile_context>

<pallas_src>
import functools

import numpy as np
import jax
import jax.numpy as jnp
from jax import lax
from jax.experimental import pallas as pl
from jax.experimental.pallas import tpu as pltpu


# ----------------------------- Pallas kernel ---------------------------------

def _dirloud_kernel(t_ref, x_ref, o_ref, *, precision):
    # t_ref: (GB*C_out, GB*C_in) block-diagonal channel-mix matrix (same block every step)
    # x_ref: (GB*C_in,  tile_t)  input slab  (time on lanes -- fast axis)
    # o_ref: (GB*C_out, tile_t)  output slab (lane-dense stores)
    o_ref[...] = jnp.dot(t_ref[...], x_ref[...],
                         preferred_element_type=jnp.float32,
                         precision=precision).astype(o_ref.dtype)


def _round_up(x, m):
    return ((x + m - 1) // m) * m


def _chip_config():
    """Generation-aware knobs: tile budget, vmem_limit cap, MXU contraction dim, precision."""
    kind = ""
    try:
        kind = jax.devices()[0].device_kind.lower()
    except Exception:
        pass
    if "v7" in kind:
        cfg = dict(budget=28 << 20, limit_cap=56 << 20, mxu=256, highest=True)
    elif "v6" in kind:
        cfg = dict(budget=80 << 20, limit_cap=100 << 20, mxu=256, highest=True)
    elif "v5" in kind:
        cfg = dict(budget=48 << 20, limit_cap=100 << 20, mxu=128, highest=False)
    else:  # v4 / unknown: conservative
        cfg = dict(budget=24 << 20, limit_cap=32 << 20, mxu=128, highest=False)
    try:  # refine with runtime-reported physical VMEM when the query is available
        vmem_phys = getattr(pltpu.get_tpu_info(), "vmem_capacity_bytes", None)
        if vmem_phys:
            cfg["budget"] = min(cfg["budget"], int(vmem_phys * 0.55))
            cfg["limit_cap"] = min(cfg["limit_cap"], int(vmem_phys * 0.85))
    except Exception:
        pass
    return cfg


def directional_loudness_forward(T_mat, X, *, tile_t=131072):
    """out[b, :, t] = T_mat @ X[b, :, t]   (== torch.matmul(T_mat, X).float())."""
    B, C_in, T = X.shape
    C_out, C_in_t = T_mat.shape
    assert C_in_t == C_in, "Wrong shape for input signal or matrix T."

    X = X.astype(jnp.float32)
    T_mat = T_mat.astype(jnp.float32)
    cfg = _chip_config()

    # ---- batch grouping: O(B) MXU work / VMEM instead of kron over the whole batch ---------
    gb_cap = max(1, cfg["mxu"] // max(C_in, C_out))        # contraction depth ~ one MXU pass
    GB = min(B, gb_cap)
    if GB < B:
        # Row blocks smaller than the full array must be sublane (8) aligned.
        while GB > 1 and ((GB * C_in) % 8 != 0 or (GB * C_out) % 8 != 0):
            GB -= 1
        if (GB * C_in) % 8 != 0 or (GB * C_out) % 8 != 0:
            GB = B                                          # full-dim block is always legal
    n_groups = pl.cdiv(B, GB)
    B_pad = n_groups * GB
    if B_pad != B:                                          # exact: T_mat @ 0 == 0, sliced below
        X = jnp.pad(X, ((0, B_pad - B), (0, 0), (0, 0)))

    R_in, R_out = GB * C_in, GB * C_out                     # per-group rows
    X2 = X.reshape(B_pad * C_in, T)                         # free row-major reshape
    T_block = jnp.kron(jnp.eye(GB, dtype=jnp.float32), T_mat)   # (R_out, R_in)

    # ---- time-tile selection (generation-aware; megacore-aware) ----------------------------
    rows_in_pad = _round_up(R_in, 8)                        # sublane padding
    rows_out_pad = _round_up(R_out, 8)
    t_block_bytes = 2 * 4 * rows_out_pad * _round_up(R_in, 128)   # counted as double-buffered
    bytes_per_col = 4 * (rows_in_pad + rows_out_pad) * 2          # double-buffered in + out
    cap_vmem = max(128, ((cfg["budget"] - t_block_bytes) // bytes_per_col) // 128 * 128)
    min_steps_t = 4 if n_groups == 1 else 2                 # >= 2 steps per TensorCore on v7x
    cap_steps = max(128, _round_up(pl.cdiv(T, min_steps_t), 128))
    tile_t = max(128, min(_round_up(tile_t, 128), cap_vmem, cap_steps))
    grid_t = pl.cdiv(T, tile_t)                             # ragged tail handled by Pallas masking

    # Enforce the budget with Mosaic instead of hoping the default scoped limit is enough.
    footprint = bytes_per_col * tile_t + t_block_bytes
    vmem_limit = int(min(cfg["limit_cap"], max(32 << 20, footprint + (8 << 20))))

    precision = lax.Precision.HIGHEST if cfg["highest"] else lax.Precision.DEFAULT
    kernel = functools.partial(_dirloud_kernel, precision=precision)

    out2 = pl.pallas_call(
        kernel,
        out_shape=jax.ShapeDtypeStruct((B_pad * C_out, T), jnp.float32),
        grid_spec=pl.GridSpec(
            grid=(n_groups, grid_t),
            in_specs=[
                # Tiny mix matrix: same block every step (stays resident across the grid).
                pl.BlockSpec((R_out, R_in), lambda g, t: (0, 0)),
                pl.BlockSpec((R_in, tile_t), lambda g, t: (g, t)),
            ],
            out_specs=pl.BlockSpec((R_out, tile_t), lambda g, t: (g, t)),
        ),
        compiler_params=pltpu.CompilerParams(
            dimension_semantics=("parallel", "parallel"),
            vmem_limit_bytes=vmem_limit),
        cost_estimate=pl.CostEstimate(
            flops=2 * n_groups * R_out * R_in * T,
            bytes_accessed=4 * T * B_pad * (C_in + C_out) + 4 * R_out * R_in,
            transcendentals=0),
    )(T_block, X2)

    return out2.reshape(B_pad, C_out, T)[:B]


# ------------------------- __init__-time parameter setup ---------------------
# (Glue in plain numpy/JAX, mirroring DirectionalLoudness.__init__ with
#  order_input=order_output=1, backend='basic', G_type='random_diag', no rotation.)

def _t_design_grid():
    """Octahedron vertices: a spherical 3-design (t_design_degree=3, n_directions=6)."""
    return np.array([[ 1., 0., 0.], [-1., 0., 0.],
                     [ 0., 1., 0.], [ 0.,-1., 0.],
                     [ 0., 0., 1.], [ 0., 0.,-1.]], dtype=np.float64)


def _real_sh_order1(grid):
    """Real spherical harmonics up to order 1, ACN ordering, N3D norm: [Y00, Y1-1, Y10, Y11]."""
    x, y, z = grid[:, 0], grid[:, 1], grid[:, 2]
    c0 = 1.0 / (2.0 * np.sqrt(np.pi))
    c1 = np.sqrt(3.0 / (4.0 * np.pi))
    return np.stack([np.full_like(x, c0), c1 * y, c1 * z, c1 * x], axis=-1)  # (n_dirs, 4)


def build_T_mat(key):
    grid = _t_design_grid()
    n_directions = grid.shape[0]
    Y = _real_sh_order1(grid)          # (n_dirs, (order_in+1)^2)  = (6, 4)
    W = _real_sh_order1(grid)          # (n_dirs, (order_out+1)^2) = (6, 4), no rotation
    # G_type='random_diag': identity with uniform[0,1) diagonal (deterministic via PRNGKey).
    g_vals = np.asarray(jax.random.uniform(key, (n_directions,), dtype=jnp.float32),
                        dtype=np.float64)
    G = np.diag(g_vals)
    # T_mat = scale * Y^T @ G @ W   (backend='basic' scaling)
    scale = 4.0 * np.pi / n_directions
    T_mat = scale * (Y.T @ G @ W)      # (4, 4)
    return jnp.asarray(T_mat, dtype=jnp.float32)


# --------------------------------- main ---------------------------------------

if __name__ == "__main__":
    key = jax.random.PRNGKey(0)
    k_g, k_x = jax.random.split(key)

    T_mat = build_T_mat(k_g)           # (4, 4)

    cfg = _chip_config()
    # Kernel uses HIGHEST MXU precision on v6e/v7x (near-f32); DEFAULT (single bf16 pass) on
    # v5-class / unknown chips to stay mem-bound -- widen the tolerance accordingly.
    tol = 1e-5 if cfg["highest"] else 5e-2

    # Ambisonics recording, channels-first: (batch, channels=(order_in+1)^2=4, time)
    B, C = 2, 4
    for T in (512, 500):               # aligned case + ragged tail (T not a multiple of 128)
        X = jax.random.normal(jax.random.fold_in(k_x, T), (B, C, T), dtype=jnp.float32)
        out = jax.block_until_ready(directional_loudness_forward(T_mat, X))
        ref = jnp.einsum("oc,bct->bot", T_mat, X, precision=lax.Precision.HIGHEST)
        np.testing.assert_allclose(np.asarray(out), np.asarray(ref), rtol=tol, atol=tol)

    # Sublane-unaligned batch*channel row count (B*C = 12) -- exercises the full-dim block path.
    B2, T2 = 3, 384
    X = jax.random.normal(jax.random.fold_in(k_x, 9999), (B2, C, T2), dtype=jnp.float32)
    out = jax.block_until_ready(directional_loudness_forward(T_mat, X))
    ref = jnp.einsum("oc,bct->bot", T_mat, X, precision=lax.Precision.HIGHEST)
    np.testing.assert_allclose(np.asarray(out), np.asarray(ref), rtol=tol, atol=tol)

    print("KERNEL_OK")
</pallas_src>

<mosaic_0001>
module attributes {stable_mosaic.version = 11 : i64} {
  func.func @_dirloud_kernel(%arg0: i32, %arg1: i32, %arg2: memref<8x8xf32, #tpu.memory_space<vmem>>, %arg3: memref<8x128xf32, #tpu.memory_space<vmem>>, %arg4: memref<8x128xf32, #tpu.memory_space<vmem>>) attributes {dimension_semantics = [#tpu.dimension_semantics<parallel>, #tpu.dimension_semantics<parallel>], iteration_bounds = array<i64: 1, 4>, scalar_prefetch = 0 : i64, scratch_operands = 0 : i64, tpu.core_type = #tpu.core_type<tc>, window_params = [{pipeline_mode = #tpu.pipeline_mode<synchronous>, transform_indices = @transform_0, window_bounds = array<i64: 8, 8>}, {transform_indices = @transform_1, window_bounds = array<i64: 8, 128>}, {transform_indices = @transform_2, window_bounds = array<i64: 8, 128>}]} {
    %c0 = arith.constant 0 : index
    %c0_0 = arith.constant 0 : index
    %0 = vector.load %arg2[%c0, %c0_0] : memref<8x8xf32, #tpu.memory_space<vmem>>, vector<8x8xf32>
    %c0_1 = arith.constant 0 : index
    %c0_2 = arith.constant 0 : index
    %1 = vector.load %arg3[%c0_1, %c0_2] : memref<8x128xf32, #tpu.memory_space<vmem>>, vector<8x128xf32>
    %cst = arith.constant dense<0.000000e+00> : vector<8x128xf32>
    %2 = tpu.matmul %0, %1, %cst {dimension_numbers = #tpu.dot_dimension_numbers<[1], [0], [0], [1], [0, 0, 1, 1], [], []>} : vector<8x8xf32>, vector<8x128xf32>, vector<8x128xf32> -> vector<8x128xf32>
    %c0_3 = arith.constant 0 : index
    %c0_4 = arith.constant 0 : index
    %3 = vector.load %arg4[%c0_3, %c0_4] : memref<8x128xf32, #tpu.memory_space<vmem>>, vector<8x128xf32>
    tpu.vector_store %arg4[%c0_3, %c0_4], %2 {strides = array<i32>} : memref<8x128xf32, #tpu.memory_space<vmem>>, vector<8x128xf32>,
    return
  }
  func.func @transform_0(%arg0: i32, %arg1: i32) -> (i32, i32) {
    %c0_i32 = arith.constant 0 : i32
    %c0_i32_0 = arith.constant 0 : i32
    %c0_i32_1 = arith.constant 0 : i32
    return %c0_i32, %c0_i32_0 : i32, i32
  }
  func.func @transform_1(%arg0: i32, %arg1: i32) -> (i32, i32) {
    %c0_i32 = arith.constant 0 : i32
    return %arg0, %arg1 : i32, i32
  }
  func.func @transform_2(%arg0: i32, %arg1: i32) -> (i32, i32) {
    %c0_i32 = arith.constant 0 : i32
    return %arg0, %arg1 : i32, i32
  }
}

</mosaic_0001>

<llo_original>
// kernel: tpu_custom_call.1
$region0: #{tpu_custom_call.1}
  #allocation0 [shape = 'u32[]', space=smem, size = 0x4, offset = 0x4, fixed_abs, tag = 'smem constant byte address 0x4 - core index']
  #allocation1 [shape = 'u32[72,128]{1,0:T(1,128)}', space=vmem, size = 0x9000, scoped, tag = 'internal scratch']
  %s0 = inlined_call_operand.hbm [shape: f32[8,8], index: 0, kind: input, shape index: {}]
  %s1 = inlined_call_operand.hbm [shape: f32[8,512], index: 1, kind: input, shape index: {}]
  %s2 = inlined_call_operand.hbm [shape: f32[8,512], index: 2, kind: output, shape index: {}]
  %s3 = sld [smem:[#allocation0]]
  $region49: #{tpu_custom_call.1} parent=0
    _
  %s5 = ssub.s32 1, %s3
  %s6 = scalar_select 0, %s5, %s3
  $region1: #{tpu_custom_call.1} parent=0
    #allocation2 [shape = 'u8[4096]{0}', space=vmem, size = 0x1000, scoped, tag = 'input window, operand 0, single buffered']
    #allocation3 [shape = 's32[2]{0}', space=sflag, size = 0x8, scoped, tag = 'scoped memory for tpu_custom_call.1']
    #allocation4 [shape = 's32[2]{0}', space=sflag, size = 0x8, scoped, tag = 'scoped memory for tpu_custom_call.1']
    #allocation5 [shape = 'u8[8192]{0}', space=vmem, size = 0x2000, scoped, tag = 'input window, operand 1']
    #allocation6 [shape = 's32[2]{0}', space=sflag, size = 0x8, scoped, tag = 'scoped memory for tpu_custom_call.1']
    #allocation7 [shape = 'u8[8192]{0}', space=vmem, size = 0x2000, scoped, tag = 'output window, operand 0']
    %7 = vsyncpa [#allocation3], 0
    %8 = vsyncpa [#allocation6], 0
    %s9 = scalar_lea.sflag [#allocation6], 1
    %10 = vsyncpa %s9, 0
    %11 = vsyncpa [#allocation4], 0
    %s12 = scalar_lea.sflag [#allocation4], 1
    %13 = vsyncpa %s12, 0
    loop: start=0, step=1, limit=6
    $region2: #{tpu_custom_call.1} parent=1 // loop_pre_header
      _
    $region3: #{tpu_custom_call.1} parent=1 // loop_header
      %s15 = sphi 0, %s19
      %p16 = scmp.ge.s32.totalorder %s15, 6
      %s22 = sphi 0, %s34
      %s23 = sphi 0, %s30
      %s24 = sphi 0, %s22
      %s25 = sphi 0, %s23
      %s26 = sphi 0, %s24
      %s27 = sphi 0, %s25
      %s35 = sphi 0, %s35
      %s37 = sphi 0, %s35
      %s38 = sphi 0, %s37
      %s52 = sphi 0, %s38
      %s60 = sphi 0, %s62
      %s63 = sphi 0, %s60
      %s64 = sphi 0, %s63
      %s80 = sphi 0, %s64
      %s88 = sphi 0, %s90
      %s91 = sphi 0, %s88
      %s92 = sphi 0, %s91
      %s108 = sphi 0, %s92
    $region4: #{tpu_custom_call.1} parent=1 // loop_header_branch
      %18 = sbr.rel (%p16) target = $region8
    $region5: #{tpu_custom_call.1} parent=1 // loop_body
      %s20 = ssub.s32 %s15, 1
      %s21 = ssub.s32 %s15, 2
      %s28 = sadd.s32 1, %s23
      %p29 = scmp.ge.s32.totalorder %s28, 4
      %s30 = scalar_select %p29, 0, %s28
      %s31 = sadd.s32 1, %s22
      %s32 = scalar_select %p29, %s31, %s22
      %p33 = scmp.ge.s32.totalorder %s32, 1
      %s34 = scalar_select %p33, 0, %s32
      %s36 = sadd.s32 %s35, 1
      %p39 = scmp.eq.s32.totalorder %s15, 3
      %p40 = scmp.ne.s32.totalorder %s35, %s37
      %p41 = scmp.eq.s32.totalorder %s15, 0
      %p42 = por %p40, %p41
      %p43 = scmp.ne.s32.totalorder %s35, %s37
      %p44 = scmp.eq.s32.totalorder %s20, 3
      %p45 = por %p43, %p44
      %p46 = scmp.ne.s32.totalorder %s37, %s38
      %p47 = scmp.eq.s32.totalorder %s20, 0
      %p48 = por %p46, %p47
      %p49 = scmp.ne.s32.totalorder %s37, %s38
      %p50 = scmp.eq.s32.totalorder %s21, 3
      %p51 = por %p49, %p50
      %p53 = scmp.ne.s32.totalorder %s38, %s52
      %p54 = scmp.eq.s32.totalorder %s21, 0
      %p55 = por %p53, %p54
      %s56 = ssub.s32 %s22, %s34
      %s57 = ssub.s32 %s23, %s30
      %s58 = sor.u32 %s56, %s57
      %p59 = scmp.eq.s32.totalorder %s58, 0
      %s61 = sadd.s32 %s60, 1
      %s62 = scalar_select %p59, %s60, %s61
      %p65 = pneg %p59
      %p66 = scmp.eq.s32.totalorder %s15, 3
      %p67 = por %p65, %p66
      %p68 = scmp.ne.s32.totalorder %s60, %s63
      %p69 = scmp.eq.s32.totalorder %s15, 0
      %p70 = por %p68, %p69
      %p71 = scmp.ne.s32.totalorder %s60, %s63
      %p72 = scmp.eq.s32.totalorder %s20, 3
      %p73 = por %p71, %p72
      %p74 = scmp.ne.s32.totalorder %s63, %s64
      %p75 = scmp.eq.s32.totalorder %s20, 0
      %p76 = por %p74, %p75
      %p77 = scmp.ne.s32.totalorder %s63, %s64
      %p78 = scmp.eq.s32.totalorder %s21, 3
      %p79 = por %p77, %p78
      %p81 = scmp.ne.s32.totalorder %s64, %s80
      %p82 = scmp.eq.s32.totalorder %s21, 0
      %p83 = por %p81, %p82
      %s84 = ssub.s32 %s22, %s34
      %s85 = ssub.s32 %s23, %s30
      %s86 = sor.u32 %s84, %s85
      %p87 = scmp.eq.s32.totalorder %s86, 0
      %s89 = sadd.s32 %s88, 1
      %s90 = scalar_select %p87, %s88, %s89
      %p93 = pneg %p87
      %p94 = scmp.eq.s32.totalorder %s15, 3
      %p95 = por %p93, %p94
      %p96 = scmp.ne.s32.totalorder %s88, %s91
      %p97 = scmp.eq.s32.totalorder %s15, 0
      %p98 = por %p96, %p97
      %p99 = scmp.ne.s32.totalorder %s88, %s91
      %p100 = scmp.eq.s32.totalorder %s20, 3
      %p101 = por %p99, %p100
      %p102 = scmp.ne.s32.totalorder %s91, %s92
      %p103 = scmp.eq.s32.totalorder %s20, 0
      %p104 = por %p102, %p103
      %p105 = scmp.ne.s32.totalorder %s91, %s92
      %p106 = scmp.eq.s32.totalorder %s21, 3
      %p107 = por %p105, %p106
      %p109 = scmp.ne.s32.totalorder %s92, %s108
      %p110 = scmp.eq.s32.totalorder %s21, 0
      %p111 = por %p109, %p110
      %p112 = scmp.le.s32.totalorder 1, %s15
      %p113 = scmp.lt.s32.totalorder %s15, 5
      %p114 = pnand %p112, %p113
      %p115 = pneg %p114
      // Predicated region
      $region9: #{tpu_custom_call.1} parent=5 // pred_check
        _
      $region10: #{tpu_custom_call.1} parent=5 // pred_check_branch
        %117 = sbr.rel (%p114) target = $region12
      $region11: #{tpu_custom_call.1} parent=5 // pred_region
        %s118 = ssub.s32 %s15, 1
        // Predicated region
        $region13: #{tpu_custom_call.1} parent=11 // pred_check
          %p119 = pneg %p48
        $region14: #{tpu_custom_call.1} parent=11 // pred_check_branch
          %121 = sbr.rel (%p119) target = $region16
        $region15: #{tpu_custom_call.1} parent=11 // pred_region
          %123 = vsyncadd [#allocation3], 0
          %s125 = sshll.u32 %s0, 4
          %s126 = int_to_ptr.hbm [resolvable:$true] %s125
          %s127 = sshll.u32 [#allocation2], 4
          %s128 = int_to_ptr.vmem [resolvable:$true] %s127
          %130 = dma.hbm_to_vmem [thread:$0]  %s126, 128, %s128, [#allocation3]
        $region16: #{tpu_custom_call.1} parent=11 // pred_fallthru
          _
      $region12: #{tpu_custom_call.1} parent=5 // pred_fallthru
        _
      %p131 = scmp.lt.s32.totalorder %s15, 4
      // Predicated region
      $region17: #{tpu_custom_call.1} parent=5 // pred_check
        %p132 = pneg %p131
      $region18: #{tpu_custom_call.1} parent=5 // pred_check_branch
        %134 = sbr.rel (%p132) target = $region20
      $region19: #{tpu_custom_call.1} parent=5 // pred_region
        // Predicated region
        $region21: #{tpu_custom_call.1} parent=19 // pred_check
          %p135 = pneg %p70
        $region22: #{tpu_custom_call.1} parent=19 // pred_check_branch
          %137 = sbr.rel (%p135) target = $region24
        $region23: #{tpu_custom_call.1} parent=19 // pred_region
          %s138 = sand.u32 %s60, 1
          %s139 = scalar_lea.sflag [#allocation6], %s138
          %s140 = sand.u32 %s60, 1
          %s141 = smul.addr %s140, 8
          %s142 = scalar_lea.vmem [#allocation5], %s141
          %144 = vsyncadd %s139, 0
          %s145 = smul.addr %s22, 4
          %s146 = sadd.s32 %s23, %s145
          %s147 = smul.addr %s146, 8
          %s148 = scalar_lea.hbm %s1, %s147
          %s150 = sshll.u32 %s148, 4
          %s151 = int_to_ptr.hbm [resolvable:$true] %s150
          %s152 = sshll.u32 %s142, 4
          %s153 = int_to_ptr.vmem [resolvable:$true] %s152
          %155 = dma.hbm_to_vmem [thread:$0]  %s151, 128, %s153, %s139
        $region24: #{tpu_custom_call.1} parent=19 // pred_fallthru
          _
      $region20: #{tpu_custom_call.1} parent=5 // pred_fallthru
        _
      %p156 = scmp.le.s32.totalorder 1, %s15
      %p157 = scmp.lt.s32.totalorder %s15, 5
      %p158 = pnand %p156, %p157
      %p159 = pneg %p158
      // Predicated region
      $region25: #{tpu_custom_call.1} parent=5 // pred_check
        _
      $region26: #{tpu_custom_call.1} parent=5 // pred_check_branch
        %161 = sbr.rel (%p158) target = $region28
      $region27: #{tpu_custom_call.1} parent=5 // pred_region
        %s162 = ssub.s32 %s15, 1
        // Predicated region
        $region29: #{tpu_custom_call.1} parent=27 // pred_check
          %p163 = pneg %p48
        $region30: #{tpu_custom_call.1} parent=27 // pred_check_branch
          %165 = sbr.rel (%p163) target = $region32
        $region31: #{tpu_custom_call.1} parent=27 // pred_region
          %167 = dma.done [#allocation3], 128
        $region32: #{tpu_custom_call.1} parent=27 // pred_fallthru
          _
        %s168 = sand.u32 %s63, 1
        %s169 = scalar_lea.sflag [#allocation6], %s168
        %s170 = sand.u32 %s63, 1
        %s171 = smul.addr %s170, 8
        %s172 = scalar_lea.vmem [#allocation5], %s171
        // Predicated region
        $region33: #{tpu_custom_call.1} parent=27 // pred_check
          %p173 = pneg %p76
        $region34: #{tpu_custom_call.1} parent=27 // pred_check_branch
          %175 = sbr.rel (%p173) target = $region36
        $region35: #{tpu_custom_call.1} parent=27 // pred_region
          %177 = dma.done %s169, 128
        $region36: #{tpu_custom_call.1} parent=27 // pred_fallthru
          _
        %p178 = pneg %p48
        %p179 = pneg %p45
        %s180 = sand.u32 %s63, 1
        %s181 = scalar_lea.sflag [#allocation6], %s180
        %s182 = sand.u32 %s63, 1
        %s183 = smul.addr %s182, 8
        %s184 = scalar_lea.vmem [#allocation5], %s183
        %p185 = pneg %p76
        %p186 = pneg %p73
        %p187 = pneg %p104
        %p188 = pneg %p101
        %s189 = sand.u32 %s91, 1
        %s190 = scalar_lea.sflag [#allocation4], %s189
        %s191 = sand.u32 %s91, 1
        %s192 = smul.addr %s191, 8
        %s193 = scalar_lea.vmem [#allocation7], %s192
        %v194 = vld [vmem:[#allocation2] sm:$0xff]
        %v195 = vld [vmem:[%s172] sm:$0xff]
        %vm196 = vcmask 64512
        %v198 = vsel %vm196, %v194, 0
        %200 = vmatpush.msra.mxu0 0.0
        %201 = vmatpush.msra.mxu0 0.0
        %202 = vmatpush.msra.mxu0 0.0
        %203 = vmatpush.msra.mxu0 0.0
        %204 = vmatpush.msra.mxu0 0.0
        %205 = vmatpush.msra.mxu0 0.0
        %206 = vmatpush.msra.mxu0 0.0
        %207 = vmatpush.msra.mxu0 0.0
        %208 = vmatpush.msra.mxu0 0.0
        %209 = vmatpush.msra.mxu0 0.0
        %210 = vmatpush.msra.mxu0 0.0
        %211 = vmatpush.msra.mxu0 0.0
        %212 = vmatpush.msra.mxu0 0.0
        %213 = vmatpush.msra.mxu0 0.0
        %214 = vmatpush.msra.mxu0 0.0
        %215 = vmatpush.msra.mxu0 %v195
        %216 = vmatmul.f32.gmra.mxu0 %v198
        %v217 = vpop.f32.mrf.mxu0
        %v218 = vadd.f32 0.0, %v217
        %219 = vdwg.mxu0
        %220 = vst [vmem:[%s193] sm:$0xff] %v218
        %s221 = sand.u32 %s91, 1
        %s222 = scalar_lea.sflag [#allocation4], %s221
        %s223 = sand.u32 %s91, 1
        %s224 = smul.addr %s223, 8
        %s225 = scalar_lea.vmem [#allocation7], %s224
        // Predicated region
        $region37: #{tpu_custom_call.1} parent=27 // pred_check
          %p226 = pneg %p101
        $region38: #{tpu_custom_call.1} parent=27 // pred_check_branch
          %228 = sbr.rel (%p226) target = $region40
        $region39: #{tpu_custom_call.1} parent=27 // pred_region
          %230 = vsyncadd %s222, 0
          %s231 = smul.addr %s24, 4
          %s232 = sadd.s32 %s25, %s231
          %s233 = smul.addr %s232, 8
          %s234 = scalar_lea.hbm %s2, %s233
          %s236 = sshll.u32 %s225, 4
          %s237 = int_to_ptr.vmem [resolvable:$true] %s236
          %s238 = sshll.u32 %s234, 4
          %s239 = int_to_ptr.hbm [resolvable:$true] %s238
          %241 = dma.vmem_to_hbm [thread:$0]  %s237, 128, %s239, %s222
        $region40: #{tpu_custom_call.1} parent=27 // pred_fallthru
          _
      $region28: #{tpu_custom_call.1} parent=5 // pred_fallthru
        _
      %p242 = scmp.le.s32.totalorder 2, %s15
      // Predicated region
      $region41: #{tpu_custom_call.1} parent=5 // pred_check
        %p243 = pneg %p242
      $region42: #{tpu_custom_call.1} parent=5 // pred_check_branch
        %245 = sbr.rel (%p243) target = $region44
      $region43: #{tpu_custom_call.1} parent=5 // pred_region
        %s246 = ssub.s32 %s15, 2
        // Predicated region
        $region45: #{tpu_custom_call.1} parent=43 // pred_check
          %p247 = pneg %p107
        $region46: #{tpu_custom_call.1} parent=43 // pred_check_branch
          %249 = sbr.rel (%p247) target = $region48
        $region47: #{tpu_custom_call.1} parent=43 // pred_region
          %s250 = sand.u32 %s92, 1
          %s251 = scalar_lea.sflag [#allocation4], %s250
          %s252 = sand.u32 %s92, 1
          %s253 = smul.addr %s252, 8
          %s254 = scalar_lea.vmem [#allocation7], %s253
          %256 = dma.done %s251, 128
        $region48: #{tpu_custom_call.1} parent=43 // pred_fallthru
          _
      $region44: #{tpu_custom_call.1} parent=5 // pred_fallthru
        _
    $region6: #{tpu_custom_call.1} parent=1 // loop_footer
      %s19 = sadd.s32 1, %s15
    $region7: #{tpu_custom_call.1} parent=1 // loop_footer_branch
      %14 = sbr.rel target = $region3
    $region8: #{tpu_custom_call.1} parent=1 // loop_exit
      _
    %257 = vsyncpa [#allocation3], 1
    %s258 = scalar_lea.sflag [#allocation3], 1
    %259 = vsyncpa %s258, 1
    %260 = vsyncpa [#allocation6], 1
    %s261 = scalar_lea.sflag [#allocation6], 1
    %262 = vsyncpa %s261, 1
    %263 = vsyncpa [#allocation4], 1
    %s264 = scalar_lea.sflag [#allocation4], 1
    %265 = vsyncpa %s264, 1

</llo_original>
